<compile_context>
chip_gen: v7x
topology: tpu7x:2x2x1
jax: 0.10.0
libtpu: 0.0.40
codegen_flags: <defaults>
</compile_context>

<pallas_src>
import math
from typing import NamedTuple

import jax
import jax.numpy as jnp
from jax.experimental import pallas as pl
from jax.experimental.pallas import tpu as pltpu

LANES = 128
SUBLANES = 8
NCHAINS = 8                        # independent accumulator vregs (breaks serial add chain)
ROW_QUANT = NCHAINS * SUBLANES     # tile_rows / rows are multiples of this (=64)

DEFAULT_TILE_ROWS = 8192           # bf16: 8192*128*2 B = 2 MiB per input per pipeline buffer
DEFAULT_SLAB_DTYPE = jnp.bfloat16  # upcast to f32 inside the kernel; accumulator is f32
VMEM_LIMIT_BYTES = 32 * 1024 * 1024  # explicit limit: covers 12 MiB of buffers on v5e too


def _round_up(x, m):
    return ((x + m - 1) // m) * m


def _cdiv(a, b):
    return -(-a // b)


def _default_core_split():
    """2 only on 2-TensorCore chips (v7x); 1 on v5e/v6e."""
    try:
        kind = jax.devices()[0].device_kind.lower()
    except Exception:  # pragma: no cover - defensive
        return 1
    return 2 if "7" in kind else 1


class EwcLayout(NamedTuple):
    names: tuple          # sorted parameter names
    sizes: tuple          # numel per name (static ints, drives FLOP bookkeeping)
    rows: int             # slab rows == core_split * tile_rows * tiles_per_core
    tile_rows: int
    core_split: int
    tiles_per_core: int
    slab_dtype: object


def make_ewc_layout(tree, tile_rows=DEFAULT_TILE_ROWS, core_split=None,
                    slab_dtype=DEFAULT_SLAB_DTYPE):
    """Derive the packing layout ONCE; reuse it for every pack/loss call."""
    if core_split is None:
        core_split = _default_core_split()
    names = tuple(sorted(tree.keys()))
    sizes = tuple(int(tree[n].size) for n in names)
    total = sum(sizes)
    rows_needed = _round_up(_cdiv(total, LANES), ROW_QUANT)
    per_core = _round_up(_cdiv(rows_needed, core_split), ROW_QUANT)
    tr = max(ROW_QUANT, min(_round_up(tile_rows, ROW_QUANT), per_core))
    rows = _round_up(rows_needed, core_split * tr)   # pad rows up, never shrink tile
    return EwcLayout(names, sizes, rows, tr, core_split,
                     rows // (core_split * tr), slab_dtype)


def pack_tree(tree, layout):
    """Flatten + concat leaves, zero-pad, reshape to a lane-dense slab (bf16)."""
    flat = jnp.concatenate([jnp.ravel(tree[n]).astype(jnp.float32)
                            for n in layout.names])
    pad = layout.rows * LANES - flat.shape[0]
    if pad:
        flat = jnp.concatenate([flat, jnp.zeros((pad,), jnp.float32)])
    return flat.reshape(layout.rows, LANES).astype(layout.slab_dtype)


def prepare_ewc_constants(fisher, original, layout):
    """Pack the training-step-invariant fisher/original trees ONCE and cache."""
    return pack_tree(fisher, layout), pack_tree(original, layout)


def ewc_flops_from_layout(layout):
    # Identical bookkeeping to the PyTorch module: numel*2 + numel + 1 per tensor.
    return sum(n * 3 + 1 for n in layout.sizes)


def _ewc_kernel(f_ref, p_ref, o_ref, out_ref):
    i = pl.program_id(1)

    @pl.when(i == 0)
    def _():
        out_ref[...] = jnp.zeros_like(out_ref)

    # bf16 slabs streamed from HBM; upcast to f32 on the VPU (free vs DMA time).
    p = p_ref[...].astype(jnp.float32)
    o = o_ref[...].astype(jnp.float32)
    f = f_ref[...].astype(jnp.float32)
    d = p - o
    x = f * d * d                                            # (tr, 128) f32, VPU only
    # Vreg-boundary regroup (tr,128) -> (tr//64, NCHAINS, 8, 128); reduce over the
    # leading dim into NCHAINS independent resident (8,128) accumulators, so the
    # dependent f32 add chain per vreg is tr/64 instead of tr/8 and the chains
    # co-issue across the VALU slots.  No XLU reduce, no scalar round trip.
    out_ref[0] += jnp.sum(x.reshape(-1, NCHAINS, SUBLANES, LANES), axis=0)


def ewc_loss_from_packed(ce_loss, p_slab, f_slab, o_slab, layout, lambda_ewc=0.4):
    """EWC total loss from pre-packed slabs (no per-step repacking)."""
    rows, tr = layout.rows, layout.tile_rows
    cs, tiles = layout.core_split, layout.tiles_per_core
    assert p_slab.shape == (rows, LANES), p_slab.shape
    assert f_slab.shape == (rows, LANES) and o_slab.shape == (rows, LANES)

    in_spec = pl.BlockSpec((tr, LANES), lambda c, i: (c * tiles + i, 0))
    # CORE_PARALLEL guarantees the leading axis shards across both TensorCores
    # on v7x; on single-TC chips the axis is size 1 and marked arbitrary.
    lead_sem = pltpu.CORE_PARALLEL if cs > 1 else pltpu.ARBITRARY

    partials = pl.pallas_call(
        _ewc_kernel,
        out_shape=jax.ShapeDtypeStruct((cs, NCHAINS, SUBLANES, LANES), jnp.float32),
        grid_spec=pltpu.PrefetchScalarGridSpec(
            num_scalar_prefetch=0,
            grid=(cs, tiles),
            in_specs=[in_spec, in_spec, in_spec],
            out_specs=pl.BlockSpec((1, NCHAINS, SUBLANES, LANES),
                                   lambda c, i: (c, 0, 0, 0)),
        ),
        compiler_params=pltpu.CompilerParams(
            dimension_semantics=(lead_sem, pltpu.ARBITRARY),
            vmem_limit_bytes=VMEM_LIMIT_BYTES),
    )(f_slab, p_slab, o_slab)

    # Tiny epilogue: reduce cs * 8 * 8 * 128 partials, then finalize.
    ewc = jnp.sum(partials)
    return jnp.asarray(ce_loss, jnp.float32) + jnp.float32(lambda_ewc) * ewc


def ewc_loss(ce_loss, params, fisher, original, lambda_ewc=0.4, layout=None,
             packed_params=None, packed_fisher=None, packed_original=None):
    """Returns (total_loss, ewc_flops) matching EWCLoss.forward.

    Supply `layout` plus packed slabs to avoid any per-step repacking.
    """
    if fisher is None or original is None:
        return ce_loss, 0
    if layout is None:
        layout = make_ewc_layout(fisher)
    flops = ewc_flops_from_layout(layout)

    # TODO(synk): in a real training loop, keep `packed_params` as a donated
    # slab the optimizer updates in place (or use memory_space=pl.ANY + a
    # scalar-prefetched offset table with manual per-leaf DMA) so parameter
    # bytes are never re-concatenated by XLA before the kernel reads them.
    p_slab = packed_params if packed_params is not None else pack_tree(params, layout)
    f_slab = packed_fisher if packed_fisher is not None else pack_tree(fisher, layout)
    o_slab = packed_original if packed_original is not None else pack_tree(original, layout)

    total = ewc_loss_from_packed(ce_loss, p_slab, f_slab, o_slab, layout, lambda_ewc)
    return total, flops


if __name__ == "__main__":
    key = jax.random.PRNGKey(0)

    # Synthetic "model" parameters, mirroring model.named_parameters().
    shapes = {
        "conv.weight": (4, 4, 3, 3),   # OIHW conv weight
        "conv.bias": (4,),
        "fc.weight": (32, 16),
        "fc.bias": (32,),
    }

    params, fisher, original = {}, {}, {}
    for name, shp in shapes.items():
        key, k1, k2, k3 = jax.random.split(key, 4)
        params[name] = jax.random.normal(k1, shp, jnp.float32)
        original[name] = jax.random.normal(k2, shp, jnp.float32)
        fisher[name] = jax.random.uniform(k3, shp, jnp.float32)  # non-negative

    ce_loss = jnp.float32(1.2345)
    lam = 0.4

    # Layout derived ONCE and shared by every pack/loss call (no silent
    # padding mismatch); fisher/original packed once, param slab packed once
    # and reused (stand-in for an optimizer-maintained packed slab).
    layout = make_ewc_layout(fisher)
    f_slab, o_slab = prepare_ewc_constants(fisher, original, layout)
    p_slab = pack_tree(params, layout)

    total, flops = ewc_loss(ce_loss, params, fisher, original, lambda_ewc=lam,
                            layout=layout, packed_params=p_slab,
                            packed_fisher=f_slab, packed_original=o_slab)
    total = jax.block_until_ready(total)

    # Reference 1: same bf16 input quantization, f32 math (tight tolerance).
    ewc_q = jnp.float32(0.0)
    ewc_f32 = jnp.float32(0.0)
    for n in layout.names:
        pq = params[n].astype(layout.slab_dtype).astype(jnp.float32)
        oq = original[n].astype(layout.slab_dtype).astype(jnp.float32)
        fq = fisher[n].astype(layout.slab_dtype).astype(jnp.float32)
        dq = pq - oq
        ewc_q = ewc_q + jnp.sum(fq * dq * dq)
        d = params[n] - original[n]
        ewc_f32 = ewc_f32 + jnp.sum(fisher[n] * d * d)
    ref_q = ce_loss + lam * ewc_q
    ref_f32 = ce_loss + lam * ewc_f32

    assert jnp.allclose(total, ref_q, rtol=1e-4, atol=1e-4), (total, ref_q)
    # Reference 2: full-precision module semantics (relaxed: bf16 slabs).
    assert jnp.allclose(total, ref_f32, rtol=5e-2, atol=5e-2), (total, ref_f32)

    expected_flops = sum(math.prod(shp) * 3 + 1 for shp in shapes.values())
    assert flops == expected_flops, (flops, expected_flops)

    print("KERNEL_OK")
</pallas_src>

<mosaic_0001>
module attributes {stable_mosaic.version = 11 : i64} {
  func.func @_ewc_kernel(%arg0: i32, %arg1: i32, %arg2: memref<64x128xbf16, #tpu.memory_space<vmem>>, %arg3: memref<64x128xbf16, #tpu.memory_space<vmem>>, %arg4: memref<64x128xbf16, #tpu.memory_space<vmem>>, %arg5: memref<1x8x8x128xf32, #tpu.memory_space<vmem>>) attributes {dimension_semantics = [#tpu.dimension_semantics<arbitrary>, #tpu.dimension_semantics<arbitrary>], iteration_bounds = array<i64: 1, 1>, scalar_prefetch = 0 : i64, scratch_operands = 0 : i64, tpu.core_type = #tpu.core_type<tc>, window_params = [{transform_indices = @transform_0, window_bounds = array<i64: 64, 128>}, {transform_indices = @transform_1, window_bounds = array<i64: 64, 128>}, {transform_indices = @transform_2, window_bounds = array<i64: 64, 128>}, {transform_indices = @transform_3, window_bounds = array<i64: 1, 8, 8, 128>}]} {
    %c0_i32 = arith.constant 0 : i32
    %0 = arith.cmpi eq, %arg1, %c0_i32 : i32
    %1 = arith.extui %0 : i1 to i32
    %c0_i32_0 = arith.constant 0 : i32
    %2 = arith.cmpi ne, %1, %c0_i32_0 : i32
    scf.if %2 {
      %cst_14 = arith.constant 0.000000e+00 : f32
      %20 = vector.broadcast %cst_14 : f32 to vector<1x8x8x128xf32>
      %c0_15 = arith.constant 0 : index
      %c0_16 = arith.constant 0 : index
      %c0_17 = arith.constant 0 : index
      %c0_18 = arith.constant 0 : index
      %21 = vector.load %arg5[%c0_15, %c0_16, %c0_17, %c0_18] : memref<1x8x8x128xf32, #tpu.memory_space<vmem>>, vector<1x8x8x128xf32>
      tpu.vector_store %arg5[%c0_15, %c0_16, %c0_17, %c0_18], %20 {strides = array<i32>} : memref<1x8x8x128xf32, #tpu.memory_space<vmem>>, vector<1x8x8x128xf32>,
    } else {
    }
    %c0 = arith.constant 0 : index
    %c0_1 = arith.constant 0 : index
    %3 = vector.load %arg3[%c0, %c0_1] : memref<64x128xbf16, #tpu.memory_space<vmem>>, vector<64x128xbf16>
    %4 = arith.extf %3 : vector<64x128xbf16> to vector<64x128xf32>
    %c0_2 = arith.constant 0 : index
    %c0_3 = arith.constant 0 : index
    %5 = vector.load %arg4[%c0_2, %c0_3] : memref<64x128xbf16, #tpu.memory_space<vmem>>, vector<64x128xbf16>
    %6 = arith.extf %5 : vector<64x128xbf16> to vector<64x128xf32>
    %c0_4 = arith.constant 0 : index
    %c0_5 = arith.constant 0 : index
    %7 = vector.load %arg2[%c0_4, %c0_5] : memref<64x128xbf16, #tpu.memory_space<vmem>>, vector<64x128xbf16>
    %8 = arith.extf %7 : vector<64x128xbf16> to vector<64x128xf32>
    %9 = arith.subf %4, %6 : vector<64x128xf32>
    %10 = arith.mulf %8, %9 : vector<64x128xf32>
    %11 = arith.mulf %10, %9 : vector<64x128xf32>
    %c0_6 = arith.constant 0 : index
    %c0_7 = arith.constant 0 : index
    %c0_8 = arith.constant 0 : index
    %c0_9 = arith.constant 0 : index
    %12 = vector.load %arg5[%c0_6, %c0_7, %c0_8, %c0_9] : memref<1x8x8x128xf32, #tpu.memory_space<vmem>>, vector<1x8x8x128xf32>
    %13 = vector.shape_cast %12 : vector<1x8x8x128xf32> to vector<8x8x128xf32>
    %14 = vector.shape_cast %11 : vector<64x128xf32> to vector<1x8x8x128xf32>
    %cst = arith.constant dense<0.000000e+00> : vector<8x8x128xf32>
    %15 = vector.multi_reduction <add>, %14, %cst [0] : vector<1x8x8x128xf32> to vector<8x8x128xf32>
    %16 = arith.addf %13, %15 : vector<8x8x128xf32>
    %c0_10 = arith.constant 0 : index
    %c0_11 = arith.constant 0 : index
    %c0_12 = arith.constant 0 : index
    %c0_13 = arith.constant 0 : index
    %17 = vector.load %arg5[%c0_10, %c0_11, %c0_12, %c0_13] : memref<1x8x8x128xf32, #tpu.memory_space<vmem>>, vector<1x8x8x128xf32>
    %18 = vector.shape_cast %17 : vector<1x8x8x128xf32> to vector<8x8x128xf32>
    %19 = vector.shape_cast %16 : vector<8x8x128xf32> to vector<1x8x8x128xf32>
    tpu.vector_store %arg5[%c0_10, %c0_11, %c0_12, %c0_13], %19 {strides = array<i32>} : memref<1x8x8x128xf32, #tpu.memory_space<vmem>>, vector<1x8x8x128xf32>,
    return
  }
  func.func @transform_0(%arg0: i32, %arg1: i32) -> (i32, i32) {
    %c1_i32 = arith.constant 1 : i32
    %0 = arith.muli %arg0, %c1_i32 : i32
    %1 = arith.addi %0, %arg1 : i32
    %c0_i32 = arith.constant 0 : i32
    %c0_i32_0 = arith.constant 0 : i32
    return %1, %c0_i32 : i32, i32
  }
  func.func @transform_1(%arg0: i32, %arg1: i32) -> (i32, i32) {
    %c1_i32 = arith.constant 1 : i32
    %0 = arith.muli %arg0, %c1_i32 : i32
    %1 = arith.addi %0, %arg1 : i32
    %c0_i32 = arith.constant 0 : i32
    %c0_i32_0 = arith.constant 0 : i32
    return %1, %c0_i32 : i32, i32
  }
  func.func @transform_2(%arg0: i32, %arg1: i32) -> (i32, i32) {
    %c1_i32 = arith.constant 1 : i32
    %0 = arith.muli %arg0, %c1_i32 : i32
    %1 = arith.addi %0, %arg1 : i32
    %c0_i32 = arith.constant 0 : i32
    %c0_i32_0 = arith.constant 0 : i32
    return %1, %c0_i32 : i32, i32
  }
  func.func @transform_3(%arg0: i32, %arg1: i32) -> (i32, i32, i32, i32) {
    %c0_i32 = arith.constant 0 : i32
    %c0_i32_0 = arith.constant 0 : i32
    %c0_i32_1 = arith.constant 0 : i32
    %c0_i32_2 = arith.constant 0 : i32
    return %arg0, %c0_i32, %c0_i32_0, %c0_i32_1 : i32, i32, i32, i32
  }
}

</mosaic_0001>

<llo_original>
// kernel: tpu_custom_call.1
$region0: #{tpu_custom_call.1}
  #allocation0 [shape = 'u32[]', space=smem, size = 0x4, offset = 0x4, fixed_abs, tag = 'smem constant byte address 0x4 - core index']
  #allocation1 [shape = 'u32[144,128]{1,0:T(1,128)}', space=vmem, size = 0x12000, scoped, tag = 'internal scratch']
  %s0 = inlined_call_operand.hbm [shape: bf16[64,128], index: 0, kind: input, shape index: {}]
  %s1 = inlined_call_operand.hbm [shape: bf16[64,128], index: 1, kind: input, shape index: {}]
  %s2 = inlined_call_operand.hbm [shape: bf16[64,128], index: 2, kind: input, shape index: {}]
  %s3 = inlined_call_operand.hbm [shape: f32[1,8,8,128], index: 3, kind: output, shape index: {}]
  %s4 = sld [smem:[#allocation0]]
  $region38: #{tpu_custom_call.1} parent=0
    _
  %s6 = ssub.s32 1, %s4
  %s7 = scalar_select 0, %s6, %s4
  $region1: #{tpu_custom_call.1} parent=0
    #allocation2 [shape = 'u8[16384]{0}', space=vmem, size = 0x4000, scoped, tag = 'input window, operand 0, single buffered']
    #allocation3 [shape = 's32[1]{0}', space=sflag, size = 0x4, scoped, tag = 'scoped memory for tpu_custom_call.1']
    #allocation4 [shape = 's32[1]{0}', space=sflag, size = 0x4, scoped, tag = 'scoped memory for tpu_custom_call.1']
    #allocation5 [shape = 'u8[16384]{0}', space=vmem, size = 0x4000, scoped, tag = 'input window, operand 1, single buffered']
    #allocation6 [shape = 's32[1]{0}', space=sflag, size = 0x4, scoped, tag = 'scoped memory for tpu_custom_call.1']
    #allocation7 [shape = 'u8[16384]{0}', space=vmem, size = 0x4000, scoped, tag = 'input window, operand 2, single buffered']
    #allocation8 [shape = 'u8[32768]{0}', space=vmem, size = 0x8000, scoped, tag = 'output window, operand 0, single buffered']
    %8 = vsyncpa [#allocation3], 0
    %9 = vsyncpa [#allocation6], 0
    %10 = vsyncpa [#allocation4], 0
    // Predicated region
    $region2: #{tpu_custom_call.1} parent=1 // pred_check
      _
    $region3: #{tpu_custom_call.1} parent=1 // pred_check_branch
      %12 = sbr.rel (0) target = $region5
    $region4: #{tpu_custom_call.1} parent=1 // pred_region
      %s13 = sadd.s32 0, 0
      %s14 = smul.u32 8, %s13
      %s16 = ssub.s32 512, 512
      %17 = vsyncadd [#allocation3], %s16
      %s18 = smul.addr %s14, 64
      %s19 = scalar_lea.hbm %s0, %s18
      %s20 = sshll.u32 [#allocation2], 4
      %s21 = int_to_ptr.vmem [resolvable:$true] %s20
      %26 = dma.hbm_to_vmem [thread:$0]  %s19, 512, %s21, [#allocation3], 64, 64, 4
    $region5: #{tpu_custom_call.1} parent=1 // pred_fallthru
      _
    // Predicated region
    $region6: #{tpu_custom_call.1} parent=1 // pred_check
      _
    $region7: #{tpu_custom_call.1} parent=1 // pred_check_branch
      %28 = sbr.rel (0) target = $region9
    $region8: #{tpu_custom_call.1} parent=1 // pred_region
      %s29 = sadd.s32 0, 0
      %s30 = smul.u32 8, %s29
      %s32 = ssub.s32 512, 512
      %33 = vsyncadd [#allocation6], %s32
      %s34 = smul.addr %s30, 64
      %s35 = scalar_lea.hbm %s1, %s34
      %s36 = sshll.u32 [#allocation5], 4
      %s37 = int_to_ptr.vmem [resolvable:$true] %s36
      %42 = dma.hbm_to_vmem [thread:$0]  %s35, 512, %s37, [#allocation6], 64, 64, 4
    $region9: #{tpu_custom_call.1} parent=1 // pred_fallthru
      _
    // Predicated region
    $region10: #{tpu_custom_call.1} parent=1 // pred_check
      _
    $region11: #{tpu_custom_call.1} parent=1 // pred_check_branch
      %44 = sbr.rel (0) target = $region13
    $region12: #{tpu_custom_call.1} parent=1 // pred_region
      %s45 = sadd.s32 0, 0
      %s46 = smul.u32 8, %s45
      %s48 = ssub.s32 512, 512
      %49 = vsyncadd [#allocation6], %s48
      %s50 = smul.addr %s46, 64
      %s51 = scalar_lea.hbm %s2, %s50
      %s52 = sshll.u32 [#allocation7], 4
      %s53 = int_to_ptr.vmem [resolvable:$true] %s52
      %58 = dma.hbm_to_vmem [thread:$0]  %s51, 512, %s53, [#allocation6], 64, 64, 4
    $region13: #{tpu_custom_call.1} parent=1 // pred_fallthru
      _
    // Predicated region
    $region14: #{tpu_custom_call.1} parent=1 // pred_check
      _
    $region15: #{tpu_custom_call.1} parent=1 // pred_check_branch
      %60 = sbr.rel (0) target = $region17
    $region16: #{tpu_custom_call.1} parent=1 // pred_region
      %61 = dma.done [#allocation3], 512
    $region17: #{tpu_custom_call.1} parent=1 // pred_fallthru
      _
    // Predicated region
    $region18: #{tpu_custom_call.1} parent=1 // pred_check
      _
    $region19: #{tpu_custom_call.1} parent=1 // pred_check_branch
      %63 = sbr.rel (0) target = $region21
    $region20: #{tpu_custom_call.1} parent=1 // pred_region
      %64 = dma.done [#allocation6], 512
    $region21: #{tpu_custom_call.1} parent=1 // pred_fallthru
      _
    // Predicated region
    $region22: #{tpu_custom_call.1} parent=1 // pred_check
      _
    $region23: #{tpu_custom_call.1} parent=1 // pred_check_branch
      %66 = sbr.rel (0) target = $region25
    $region24: #{tpu_custom_call.1} parent=1 // pred_region
      %67 = dma.done [#allocation6], 512
    $region25: #{tpu_custom_call.1} parent=1 // pred_fallthru
      _
    %s68 = sadd.s32 0, 0
    %s69 = smul.u32 8, %s68
    %s70 = sadd.s32 0, 0
    %s71 = smul.u32 8, %s70
    %s72 = sadd.s32 0, 0
    %s73 = smul.u32 8, %s72
    %p74 = scmp.eq.s32.totalorder 0, 0
    // Predicated region
    $region26: #{tpu_custom_call.1} parent=1 // pred_check
      %p75 = pneg %p74
    $region27: #{tpu_custom_call.1} parent=1 // pred_check_branch
      %77 = sbr.rel (%p75) target = $region29
    $region28: #{tpu_custom_call.1} parent=1 // pred_region
      %78 = vst [vmem:[#allocation8] sm:$0xff] 0.0
      %79 = vst [vmem:[#allocation8 + $0x8] sm:$0xff] 0.0
      %80 = vst [vmem:[#allocation8 + $0x10] sm:$0xff] 0.0
      %81 = vst [vmem:[#allocation8 + $0x18] sm:$0xff] 0.0
      %82 = vst [vmem:[#allocation8 + $0x20] sm:$0xff] 0.0
      %83 = vst [vmem:[#allocation8 + $0x28] sm:$0xff] 0.0
      %84 = vst [vmem:[#allocation8 + $0x30] sm:$0xff] 0.0
      %85 = vst [vmem:[#allocation8 + $0x38] sm:$0xff] 0.0
    $region29: #{tpu_custom_call.1} parent=1 // pred_fallthru
      _
    %v86 = vld [vmem:[#allocation5] sm:$0xf]
    %v87 = vld [vmem:[#allocation5 + $0x4] sm:$0xf]
    %v88 = vld [vmem:[#allocation5 + $0x8] sm:$0xf]
    %v89 = vld [vmem:[#allocation5 + $0xc] sm:$0xf]
    %v90 = vld [vmem:[#allocation5 + $0x10] sm:$0xf]
    %v91 = vld [vmem:[#allocation5 + $0x14] sm:$0xf]
    %v92 = vld [vmem:[#allocation5 + $0x18] sm:$0xf]
    %v93 = vld [vmem:[#allocation5 + $0x1c] sm:$0xf]
    %v94 = vunpack.c.l.bf16 %v86
    %v95 = vunpack.c.l.bf16 %v87
    %v96 = vunpack.c.l.bf16 %v88
    %v97 = vunpack.c.l.bf16 %v89
    %v98 = vunpack.c.l.bf16 %v90
    %v99 = vunpack.c.l.bf16 %v91
    %v100 = vunpack.c.l.bf16 %v92
    %v101 = vunpack.c.l.bf16 %v93
    %v102 = vld [vmem:[#allocation7] sm:$0xf]
    %v103 = vld [vmem:[#allocation7 + $0x4] sm:$0xf]
    %v104 = vld [vmem:[#allocation7 + $0x8] sm:$0xf]
    %v105 = vld [vmem:[#allocation7 + $0xc] sm:$0xf]
    %v106 = vld [vmem:[#allocation7 + $0x10] sm:$0xf]
    %v107 = vld [vmem:[#allocation7 + $0x14] sm:$0xf]
    %v108 = vld [vmem:[#allocation7 + $0x18] sm:$0xf]
    %v109 = vld [vmem:[#allocation7 + $0x1c] sm:$0xf]
    %v110 = vunpack.c.l.bf16 %v102
    %v111 = vunpack.c.l.bf16 %v103
    %v112 = vunpack.c.l.bf16 %v104
    %v113 = vunpack.c.l.bf16 %v105
    %v114 = vunpack.c.l.bf16 %v106
    %v115 = vunpack.c.l.bf16 %v107
    %v116 = vunpack.c.l.bf16 %v108
    %v117 = vunpack.c.l.bf16 %v109
    %v118 = vld [vmem:[#allocation2] sm:$0xf]
    %v119 = vld [vmem:[#allocation2 + $0x4] sm:$0xf]
    %v120 = vld [vmem:[#allocation2 + $0x8] sm:$0xf]
    %v121 = vld [vmem:[#allocation2 + $0xc] sm:$0xf]
    %v122 = vld [vmem:[#allocation2 + $0x10] sm:$0xf]
    %v123 = vld [vmem:[#allocation2 + $0x14] sm:$0xf]
    %v124 = vld [vmem:[#allocation2 + $0x18] sm:$0xf]
    %v125 = vld [vmem:[#allocation2 + $0x1c] sm:$0xf]
    %v126 = vunpack.c.l.bf16 %v118
    %v127 = vunpack.c.l.bf16 %v119
    %v128 = vunpack.c.l.bf16 %v120
    %v129 = vunpack.c.l.bf16 %v121
    %v130 = vunpack.c.l.bf16 %v122
    %v131 = vunpack.c.l.bf16 %v123
    %v132 = vunpack.c.l.bf16 %v124
    %v133 = vunpack.c.l.bf16 %v125
    %v134 = vsub.f32 %v94, %v110
    %v135 = vsub.f32 %v95, %v111
    %v136 = vsub.f32 %v96, %v112
    %v137 = vsub.f32 %v97, %v113
    %v138 = vsub.f32 %v98, %v114
    %v139 = vsub.f32 %v99, %v115
    %v140 = vsub.f32 %v100, %v116
    %v141 = vsub.f32 %v101, %v117
    %v142 = vmul.f32 %v126, %v134
    %v143 = vmul.f32 %v127, %v135
    %v144 = vmul.f32 %v128, %v136
    %v145 = vmul.f32 %v129, %v137
    %v146 = vmul.f32 %v130, %v138
    %v147 = vmul.f32 %v131, %v139
    %v148 = vmul.f32 %v132, %v140
    %v149 = vmul.f32 %v133, %v141
    %v150 = vmul.f32 %v142, %v134
    %v151 = vmul.f32 %v143, %v135
    %v152 = vmul.f32 %v144, %v136
    %v153 = vmul.f32 %v145, %v137
    %v154 = vmul.f32 %v146, %v138
    %v155 = vmul.f32 %v147, %v139
    %v156 = vmul.f32 %v148, %v140
    %v157 = vmul.f32 %v149, %v141
    %v158 = vld [vmem:[#allocation8] sm:$0xff]
    %v159 = vld [vmem:[#allocation8 + $0x8] sm:$0xff]
    %v160 = vld [vmem:[#allocation8 + $0x10] sm:$0xff]
    %v161 = vld [vmem:[#allocation8 + $0x18] sm:$0xff]
    %v162 = vld [vmem:[#allocation8 + $0x20] sm:$0xff]
    %v163 = vld [vmem:[#allocation8 + $0x28] sm:$0xff]
    %v164 = vld [vmem:[#allocation8 + $0x30] sm:$0xff]
    %v165 = vld [vmem:[#allocation8 + $0x38] sm:$0xff]
    %v166 = vadd.f32 %v150, 0.0
    %v167 = vadd.f32 %v151, 0.0
    %v168 = vadd.f32 %v152, 0.0
    %v169 = vadd.f32 %v153, 0.0
    %v170 = vadd.f32 %v154, 0.0
    %v171 = vadd.f32 %v155, 0.0
    %v172 = vadd.f32 %v156, 0.0
    %v173 = vadd.f32 %v157, 0.0
    %v174 = vadd.f32 %v158, %v166
    %v175 = vadd.f32 %v159, %v167
    %v176 = vadd.f32 %v160, %v168
    %v177 = vadd.f32 %v161, %v169
    %v178 = vadd.f32 %v162, %v170
    %v179 = vadd.f32 %v163, %v171
    %v180 = vadd.f32 %v164, %v172
    %v181 = vadd.f32 %v165, %v173
    %182 = vst [vmem:[#allocation8] sm:$0xff] %v174
    %183 = vst [vmem:[#allocation8 + $0x8] sm:$0xff] %v175
    %184 = vst [vmem:[#allocation8 + $0x10] sm:$0xff] %v176
    %185 = vst [vmem:[#allocation8 + $0x18] sm:$0xff] %v177
    %186 = vst [vmem:[#allocation8 + $0x20] sm:$0xff] %v178
    %187 = vst [vmem:[#allocation8 + $0x28] sm:$0xff] %v179
    %188 = vst [vmem:[#allocation8 + $0x30] sm:$0xff] %v180
    %189 = vst [vmem:[#allocation8 + $0x38] sm:$0xff] %v181
    // Predicated region
    $region30: #{tpu_custom_call.1} parent=1 // pred_check
      _
    $region31: #{tpu_custom_call.1} parent=1 // pred_check_branch
      %191 = sbr.rel (0) target = $region33
    $region32: #{tpu_custom_call.1} parent=1 // pred_region
      %s193 = ssub.s32 1024, 1024
      %194 = vsyncadd [#allocation4], %s193
      %s195 = sshll.u32 [#allocation8], 4
      %s196 = int_to_ptr.vmem [resolvable:$true] %s195
      %201 = dma.vmem_to_hbm [thread:$0]  %s196, 1024, %s3, [#allocation4], 128, 128, 8
    $region33: #{tpu_custom_call.1} parent=1 // pred_fallthru
      _
    // Predicated region
    $region34: #{tpu_custom_call.1} parent=1 // pred_check
      _
    $region35: #{tpu_custom_call.1} parent=1 // pred_check_branch
      %203 = sbr.rel (0) target = $region37
    $region36: #{tpu_custom_call.1} parent=1 // pred_region
      %204 = dma.done [#allocation4], 1024
    $region37: #{tpu_custom_call.1} parent=1 // pred_fallthru
      _
    %205 = vsyncpa [#allocation3], 1
    %206 = vsyncpa [#allocation6], 1
    %207 = vsyncpa [#allocation4], 1

</llo_original>
